<compile_context>
chip_gen: v6e
topology: v6e:2x2x1
jax: 0.10.0
libtpu: 0.0.40
codegen_flags: <defaults>
</compile_context>

<pallas_src>
import jax
import jax.numpy as jnp
from jax import lax
from jax.experimental import pallas as pl
from jax.experimental.pallas import tpu as pltpu


def progress_net_kernel(x_ref, w1_ref, b1_ref, w2_ref, b2_ref, w3_ref, b3_ref,
                        o_ref):
    # x_ref: [tb, in]; w*: [in, out] (pre-transposed); b*: [1, out]; o_ref: [tb, out].
    # Batch lives on sublanes, features on lanes; rows are fully independent.

    # ---- fc1 + ReLU (MXU, f32 operands, K = in_size = 2) ----
    h1 = jnp.dot(x_ref[...], w1_ref[...],
                 preferred_element_type=jnp.float32) + b1_ref[...]
    h1 = jnp.maximum(h1, 0.0).astype(w2_ref.dtype)   # single cast for the next MXU pass

    # ---- fc2 + ReLU (MXU, bf16 operands, f32 accumulation) ----
    h2 = jnp.dot(h1, w2_ref[...],
                 preferred_element_type=jnp.float32) + b2_ref[...]
    h2 = jnp.maximum(h2, 0.0).astype(w3_ref.dtype)

    # ---- fc3 (MXU) ----
    y = jnp.dot(h2, w3_ref[...],
                preferred_element_type=jnp.float32) + b3_ref[...]

    # ---- L2-normalize along the feature axis (2 lanes) ----
    ss = jnp.sum(y * y, axis=1, keepdims=True)        # [tb, 1]
    inv = lax.rsqrt(jnp.maximum(ss, 1e-24))           # == 1 / max(||y||, 1e-12), on the EUP
    o_ref[...] = (y * inv).astype(o_ref.dtype)


def _round_up(n, m):
    return ((n + m - 1) // m) * m


def progress_network_forward(x, params, *, batch_tile=8192,
                             matmul_dtype=jnp.bfloat16,
                             vmem_limit_bytes=48 * 1024 * 1024):
    """x: [B, input_size] float32 -> [B, output_size] float32 (batch-major I/O)."""
    w1, b1, w2, b2, w3, b3 = params          # PyTorch nn.Linear convention: w [out,in], b [out]
    x = jnp.asarray(x, jnp.float32)
    B, in_size = x.shape
    hidden = w1.shape[0]
    out_size = w3.shape[0]

    # One-time tiny parameter repack (outside the kernel, ~18 KB total):
    #  * transpose to [in, out] so the batch-major matmuls need no in-kernel transposes,
    #  * pre-cast fc2/fc3 weights to the MXU operand dtype (no per-step casts),
    #  * biases as [1, out] rows (sublane-broadcast over the batch tile).
    w1t = jnp.asarray(w1, jnp.float32).T               # [in, H] (f32: input-layer precision)
    w2t = jnp.asarray(w2, matmul_dtype).T              # [H, H]
    w3t = jnp.asarray(w3, matmul_dtype).T              # [H, out]
    b1r = jnp.asarray(b1, jnp.float32).reshape(1, hidden)
    b2r = jnp.asarray(b2, jnp.float32).reshape(1, hidden)
    b3r = jnp.asarray(b3, jnp.float32).reshape(1, out_size)

    # Batch tile: large enough to amortize the per-grid-step cost; >= 2 blocks
    # for big batches (feeds both TensorCores on v7x); sublane-aligned
    # (multiple of 8) whenever it is not the full batch.
    if B <= batch_tile:
        if B > 2048:
            tb = _round_up((B + 1) // 2, 8)            # split into (>=) 2 blocks
        else:
            tb = B                                     # single full-array block
    else:
        tb = _round_up(batch_tile, 8)
    n_blocks = pl.cdiv(B, tb)                          # partial last block handled by Pallas

    flops = 2 * B * (in_size * hidden + hidden * hidden + hidden * out_size)
    bytes_accessed = (x.size + B * out_size) * 4 + sum(
        int(a.size) * a.dtype.itemsize for a in (w1t, b1r, w2t, b2r, w3t, b3r))

    def resident(a):
        # Full array, same block every grid step -> loaded once, stays VMEM-resident.
        return pl.BlockSpec(a.shape, lambda i: (0, 0))

    out = pl.pallas_call(
        progress_net_kernel,
        out_shape=jax.ShapeDtypeStruct((B, out_size), jnp.float32),
        grid=(n_blocks,),
        in_specs=[
            pl.BlockSpec((tb, in_size), lambda i: (i, 0)),
            resident(w1t), resident(b1r),
            resident(w2t), resident(b2r),
            resident(w3t), resident(b3r),
        ],
        out_specs=pl.BlockSpec((tb, out_size), lambda i: (i, 0)),
        compiler_params=pltpu.CompilerParams(
            dimension_semantics=("parallel",),
            vmem_limit_bytes=vmem_limit_bytes),
        cost_estimate=pl.CostEstimate(
            flops=flops, transcendentals=B, bytes_accessed=bytes_accessed),
    )(x, w1t, b1r, w2t, b2r, w3t, b3r)
    return out


def init_params(key, input_size=2, hidden_size=64, output_size=2):
    """nn.Linear-style U(-1/sqrt(fan_in), 1/sqrt(fan_in)); w: [out, in], b: [out]."""
    ks = jax.random.split(key, 6)

    def lin(kw, kb, fan_in, fan_out):
        bound = 1.0 / jnp.sqrt(jnp.float32(fan_in))
        w = jax.random.uniform(kw, (fan_out, fan_in), jnp.float32, -bound, bound)
        b = jax.random.uniform(kb, (fan_out,), jnp.float32, -bound, bound)
        return w, b

    w1, b1 = lin(ks[0], ks[1], input_size, hidden_size)
    w2, b2 = lin(ks[2], ks[3], hidden_size, hidden_size)
    w3, b3 = lin(ks[4], ks[5], hidden_size, output_size)
    return (w1, b1, w2, b2, w3, b3)


def reference_forward_f32(x, params):
    """Pure-f32 JAX reference of the PyTorch forward. Returns (normalized, pre-norm y)."""
    w1, b1, w2, b2, w3, b3 = params
    h1 = jnp.maximum(x @ w1.T + b1, 0.0)
    h2 = jnp.maximum(h1 @ w2.T + b2, 0.0)
    y = h2 @ w3.T + b3
    norm = jnp.linalg.norm(y, axis=1, keepdims=True)
    return y / jnp.maximum(norm, 1e-12), y


def reference_forward_bf16(x, params):
    """Pure-JAX reference mirroring the kernel's precision (fc2/fc3 bf16, f32 accum)."""
    w1, b1, w2, b2, w3, b3 = params
    h1 = jnp.maximum(x @ w1.T + b1, 0.0)
    h2 = jnp.dot(h1.astype(jnp.bfloat16), w2.T.astype(jnp.bfloat16),
                 preferred_element_type=jnp.float32) + b2
    h2 = jnp.maximum(h2, 0.0)
    y = jnp.dot(h2.astype(jnp.bfloat16), w3.T.astype(jnp.bfloat16),
                preferred_element_type=jnp.float32) + b3
    norm = jnp.linalg.norm(y, axis=1, keepdims=True)
    return y / jnp.maximum(norm, 1e-12)


def _check(x, params, batch_tile):
    out = jax.block_until_ready(
        progress_network_forward(x, params, batch_tile=batch_tile))
    B, out_size = x.shape[0], params[4].shape[0]
    assert out.shape == (B, out_size)
    assert bool(jnp.all(jnp.isfinite(out)))
    # Output rows are unit-norm.
    assert jnp.allclose(jnp.linalg.norm(out, axis=1), 1.0, atol=1e-3)
    # Match the bf16-precision reference (same math as the kernel).
    ref_bf16 = reference_forward_bf16(x, params)
    assert jnp.allclose(out, ref_bf16, atol=2e-2)
    # Norm-aware comparison vs the full-f32 reference (bounds the absolute pre-norm
    # error, immune to normalization amplifying bf16 noise when ||y|| is small).
    ref_f32, y_pre = reference_forward_f32(x, params)
    row_err = jnp.linalg.norm(out - ref_f32, axis=1)
    row_scale = jnp.linalg.norm(y_pre, axis=1)
    assert float(jnp.max(row_err * row_scale)) < 2e-2
    return out


if __name__ == "__main__":
    key = jax.random.PRNGKey(0)
    k_x1, k_x2, k_p = jax.random.split(key, 3)

    input_size, hidden_size, output_size = 2, 64, 2
    params = init_params(k_p, input_size, hidden_size, output_size)

    # Small batch: single full-array block.
    x_small = jax.random.normal(k_x1, (8, input_size), dtype=jnp.float32)
    _check(x_small, params, batch_tile=8192)

    # Multi-block path: 3 blocks of 128 rows with a partial last block (no padding).
    x_multi = jax.random.normal(k_x2, (300, input_size), dtype=jnp.float32)
    _check(x_multi, params, batch_tile=128)

    print("KERNEL_OK")
</pallas_src>

<mosaic_0001>
module attributes {stable_mosaic.version = 11 : i64} {
  func.func @progress_net_kernel(%arg0: i32, %arg1: memref<8x2xf32, #tpu.memory_space<vmem>>, %arg2: memref<2x64xf32, #tpu.memory_space<vmem>>, %arg3: memref<1x64xf32, #tpu.memory_space<vmem>>, %arg4: memref<64x64xbf16, #tpu.memory_space<vmem>>, %arg5: memref<1x64xf32, #tpu.memory_space<vmem>>, %arg6: memref<64x2xbf16, #tpu.memory_space<vmem>>, %arg7: memref<1x2xf32, #tpu.memory_space<vmem>>, %arg8: memref<8x2xf32, #tpu.memory_space<vmem>>) attributes {dimension_semantics = [#tpu.dimension_semantics<parallel>], iteration_bounds = array<i64: 1>, scalar_prefetch = 0 : i64, scratch_operands = 0 : i64, tpu.core_type = #tpu.core_type<tc>, window_params = [{transform_indices = @transform_0, window_bounds = array<i64: 8, 2>}, {pipeline_mode = #tpu.pipeline_mode<synchronous>, transform_indices = @transform_1, window_bounds = array<i64: 2, 64>}, {pipeline_mode = #tpu.pipeline_mode<synchronous>, transform_indices = @transform_2, window_bounds = array<i64: 1, 64>}, {pipeline_mode = #tpu.pipeline_mode<synchronous>, transform_indices = @transform_3, window_bounds = array<i64: 64, 64>}, {pipeline_mode = #tpu.pipeline_mode<synchronous>, transform_indices = @transform_4, window_bounds = array<i64: 1, 64>}, {pipeline_mode = #tpu.pipeline_mode<synchronous>, transform_indices = @transform_5, window_bounds = array<i64: 64, 2>}, {pipeline_mode = #tpu.pipeline_mode<synchronous>, transform_indices = @transform_6, window_bounds = array<i64: 1, 2>}, {transform_indices = @transform_7, window_bounds = array<i64: 8, 2>}]} {
    %c0 = arith.constant 0 : index
    %c0_0 = arith.constant 0 : index
    %0 = vector.load %arg1[%c0, %c0_0] : memref<8x2xf32, #tpu.memory_space<vmem>>, vector<8x2xf32>
    %c0_1 = arith.constant 0 : index
    %c0_2 = arith.constant 0 : index
    %1 = vector.load %arg2[%c0_1, %c0_2] : memref<2x64xf32, #tpu.memory_space<vmem>>, vector<2x64xf32>
    %cst = arith.constant dense<0.000000e+00> : vector<8x64xf32>
    %2 = tpu.matmul %0, %1, %cst {dimension_numbers = #tpu.dot_dimension_numbers<[1], [0], [0], [1], [0, 0, 1, 1], [], []>} : vector<8x2xf32>, vector<2x64xf32>, vector<8x64xf32> -> vector<8x64xf32>
    %c0_3 = arith.constant 0 : index
    %c0_4 = arith.constant 0 : index
    %3 = vector.load %arg3[%c0_3, %c0_4] : memref<1x64xf32, #tpu.memory_space<vmem>>, vector<1x64xf32>
    %4 = vector.broadcast %3 : vector<1x64xf32> to vector<8x64xf32>
    %5 = arith.addf %2, %4 : vector<8x64xf32>
    %cst_5 = arith.constant 0.000000e+00 : f32
    %6 = vector.broadcast %cst_5 : f32 to vector<8x64xf32>
    %7 = arith.maximumf %5, %6 : vector<8x64xf32>
    %8 = arith.truncf %7 : vector<8x64xf32> to vector<8x64xbf16>
    %c0_6 = arith.constant 0 : index
    %c0_7 = arith.constant 0 : index
    %9 = vector.load %arg4[%c0_6, %c0_7] : memref<64x64xbf16, #tpu.memory_space<vmem>>, vector<64x64xbf16>
    %cst_8 = arith.constant dense<0.000000e+00> : vector<8x64xf32>
    %10 = tpu.matmul %8, %9, %cst_8 {dimension_numbers = #tpu.dot_dimension_numbers<[1], [0], [0], [1], [0, 0, 1, 1], [], []>} : vector<8x64xbf16>, vector<64x64xbf16>, vector<8x64xf32> -> vector<8x64xf32>
    %c0_9 = arith.constant 0 : index
    %c0_10 = arith.constant 0 : index
    %11 = vector.load %arg5[%c0_9, %c0_10] : memref<1x64xf32, #tpu.memory_space<vmem>>, vector<1x64xf32>
    %12 = vector.broadcast %11 : vector<1x64xf32> to vector<8x64xf32>
    %13 = arith.addf %10, %12 : vector<8x64xf32>
    %cst_11 = arith.constant 0.000000e+00 : f32
    %14 = vector.broadcast %cst_11 : f32 to vector<8x64xf32>
    %15 = arith.maximumf %13, %14 : vector<8x64xf32>
    %16 = arith.truncf %15 : vector<8x64xf32> to vector<8x64xbf16>
    %c0_12 = arith.constant 0 : index
    %c0_13 = arith.constant 0 : index
    %17 = vector.load %arg6[%c0_12, %c0_13] : memref<64x2xbf16, #tpu.memory_space<vmem>>, vector<64x2xbf16>
    %cst_14 = arith.constant dense<0.000000e+00> : vector<8x2xf32>
    %18 = tpu.matmul %16, %17, %cst_14 {dimension_numbers = #tpu.dot_dimension_numbers<[1], [0], [0], [1], [0, 0, 1, 1], [], []>} : vector<8x64xbf16>, vector<64x2xbf16>, vector<8x2xf32> -> vector<8x2xf32>
    %c0_15 = arith.constant 0 : index
    %c0_16 = arith.constant 0 : index
    %19 = vector.load %arg7[%c0_15, %c0_16] : memref<1x2xf32, #tpu.memory_space<vmem>>, vector<1x2xf32>
    %20 = vector.broadcast %19 : vector<1x2xf32> to vector<8x2xf32>
    %21 = arith.addf %18, %20 : vector<8x2xf32>
    %22 = arith.mulf %21, %21 : vector<8x2xf32>
    %cst_17 = arith.constant dense<0.000000e+00> : vector<8xf32>
    %23 = vector.multi_reduction <add>, %22, %cst_17 [1] : vector<8x2xf32> to vector<8xf32>
    %24 = vector.shape_cast %23 : vector<8xf32> to vector<8x1xf32>
    %cst_18 = arith.constant 1.000000e-24 : f32
    %25 = vector.broadcast %cst_18 : f32 to vector<8x1xf32>
    %26 = arith.maximumf %24, %25 : vector<8x1xf32>
    %27 = math.rsqrt %26 : vector<8x1xf32>
    %28 = vector.broadcast %27 : vector<8x1xf32> to vector<8x2xf32>
    %29 = arith.mulf %21, %28 : vector<8x2xf32>
    %c0_19 = arith.constant 0 : index
    %c0_20 = arith.constant 0 : index
    %30 = vector.load %arg8[%c0_19, %c0_20] : memref<8x2xf32, #tpu.memory_space<vmem>>, vector<8x2xf32>
    tpu.vector_store %arg8[%c0_19, %c0_20], %29 {strides = array<i32>} : memref<8x2xf32, #tpu.memory_space<vmem>>, vector<8x2xf32>,
    return
  }
  func.func @transform_0(%arg0: i32) -> (i32, i32) {
    %c0_i32 = arith.constant 0 : i32
    %c0_i32_0 = arith.constant 0 : i32
    return %arg0, %c0_i32 : i32, i32
  }
  func.func @transform_1(%arg0: i32) -> (i32, i32) {
    %c0_i32 = arith.constant 0 : i32
    %c0_i32_0 = arith.constant 0 : i32
    %c0_i32_1 = arith.constant 0 : i32
    return %c0_i32, %c0_i32_0 : i32, i32
  }
  func.func @transform_2(%arg0: i32) -> (i32, i32) {
    %c0_i32 = arith.constant 0 : i32
    %c0_i32_0 = arith.constant 0 : i32
    %c0_i32_1 = arith.constant 0 : i32
    return %c0_i32, %c0_i32_0 : i32, i32
  }
  func.func @transform_3(%arg0: i32) -> (i32, i32) {
    %c0_i32 = arith.constant 0 : i32
    %c0_i32_0 = arith.constant 0 : i32
    %c0_i32_1 = arith.constant 0 : i32
    return %c0_i32, %c0_i32_0 : i32, i32
  }
  func.func @transform_4(%arg0: i32) -> (i32, i32) {
    %c0_i32 = arith.constant 0 : i32
    %c0_i32_0 = arith.constant 0 : i32
    %c0_i32_1 = arith.constant 0 : i32
    return %c0_i32, %c0_i32_0 : i32, i32
  }
  func.func @transform_5(%arg0: i32) -> (i32, i32) {
    %c0_i32 = arith.constant 0 : i32
    %c0_i32_0 = arith.constant 0 : i32
    %c0_i32_1 = arith.constant 0 : i32
    return %c0_i32, %c0_i32_0 : i32, i32
  }
  func.func @transform_6(%arg0: i32) -> (i32, i32) {
    %c0_i32 = arith.constant 0 : i32
    %c0_i32_0 = arith.constant 0 : i32
    %c0_i32_1 = arith.constant 0 : i32
    return %c0_i32, %c0_i32_0 : i32, i32
  }
  func.func @transform_7(%arg0: i32) -> (i32, i32) {
    %c0_i32 = arith.constant 0 : i32
    %c0_i32_0 = arith.constant 0 : i32
    return %arg0, %c0_i32 : i32, i32
  }
}

</mosaic_0001>

<llo_original>
// kernel: tpu_custom_call.1
$region0: #{tpu_custom_call.1}
  #allocation0 [shape = 'u32[]', space=smem, size = 0x4, offset = 0x4, fixed_abs, tag = 'smem constant byte address 0x4 - core index']
  #allocation1 [shape = 'u32[144,128]{1,0:T(1,128)}', space=vmem, size = 0x12000, scoped, tag = 'internal scratch']
  %s0 = inlined_call_operand.vmem [shape: f32[8,2], index: 0, kind: input, shape index: {}]
  %s1 = inlined_call_operand.vmem [shape: f32[2,64], index: 1, kind: input, shape index: {}]
  %s2 = inlined_call_operand.vmem [shape: f32[1,64], index: 2, kind: input, shape index: {}]
  %s3 = inlined_call_operand.vmem [shape: bf16[64,64], index: 3, kind: input, shape index: {}]
  %s4 = inlined_call_operand.vmem [shape: f32[1,64], index: 4, kind: input, shape index: {}]
  %s5 = inlined_call_operand.vmem [shape: bf16[64,2], index: 5, kind: input, shape index: {}]
  %s6 = inlined_call_operand.vmem [shape: f32[1,2], index: 6, kind: input, shape index: {}]
  %s7 = inlined_call_operand.vmem [shape: f32[8,2], index: 7, kind: output, shape index: {}]
  %s8 = sld [smem:[#allocation0]]
  $region38: #{tpu_custom_call.1} parent=0
    _
  %s10 = ssub.s32 1, %s8
  %s11 = scalar_select 0, %s10, %s8
  // Predicated region
  $region2: #{tpu_custom_call.1} parent=0 // pred_check
    _
  $region3: #{tpu_custom_call.1} parent=0 // pred_check_branch
    %13 = sbr.rel (0) target = $region5
  $region4: #{tpu_custom_call.1} parent=0 // pred_region
    _
  $region5: #{tpu_custom_call.1} parent=0 // pred_fallthru
    _
  // Predicated region
  $region6: #{tpu_custom_call.1} parent=0 // pred_check
    _
  $region7: #{tpu_custom_call.1} parent=0 // pred_check_branch
    %15 = sbr.rel (0) target = $region9
  $region8: #{tpu_custom_call.1} parent=0 // pred_region
    _
  $region9: #{tpu_custom_call.1} parent=0 // pred_fallthru
    _
  // Predicated region
  $region10: #{tpu_custom_call.1} parent=0 // pred_check
    _
  $region11: #{tpu_custom_call.1} parent=0 // pred_check_branch
    %17 = sbr.rel (0) target = $region13
  $region12: #{tpu_custom_call.1} parent=0 // pred_region
    _
  $region13: #{tpu_custom_call.1} parent=0 // pred_fallthru
    _
  // Predicated region
  $region14: #{tpu_custom_call.1} parent=0 // pred_check
    _
  $region15: #{tpu_custom_call.1} parent=0 // pred_check_branch
    %19 = sbr.rel (0) target = $region17
  $region16: #{tpu_custom_call.1} parent=0 // pred_region
    _
  $region17: #{tpu_custom_call.1} parent=0 // pred_fallthru
    _
  // Predicated region
  $region18: #{tpu_custom_call.1} parent=0 // pred_check
    _
  $region19: #{tpu_custom_call.1} parent=0 // pred_check_branch
    %21 = sbr.rel (0) target = $region21
  $region20: #{tpu_custom_call.1} parent=0 // pred_region
    _
  $region21: #{tpu_custom_call.1} parent=0 // pred_fallthru
    _
  // Predicated region
  $region22: #{tpu_custom_call.1} parent=0 // pred_check
    _
  $region23: #{tpu_custom_call.1} parent=0 // pred_check_branch
    %23 = sbr.rel (0) target = $region25
  $region24: #{tpu_custom_call.1} parent=0 // pred_region
    _
  $region25: #{tpu_custom_call.1} parent=0 // pred_fallthru
    _
  // Predicated region
  $region26: #{tpu_custom_call.1} parent=0 // pred_check
    _
  $region27: #{tpu_custom_call.1} parent=0 // pred_check_branch
    %25 = sbr.rel (0) target = $region29
  $region28: #{tpu_custom_call.1} parent=0 // pred_region
    _
  $region29: #{tpu_custom_call.1} parent=0 // pred_fallthru
    _
  %v27 = vld [vmem:[%s0] sm:$0xff]
  %v28 = vld [vmem:[%s1] sm:$0x3]
  %v29 = vld [vmem:[%s2] sm:$0x1]
  %v31 = vlaneseq
  %v32 = vshrl.u32 %v31, 7
  %v33 = vsub.s32 0, %v32
  %v34 = vrot.slane %v29, %v33
  %vm36 = vcmask 15360
  %v38 = vsel %vm36, %v27, 0
  %vm40 = vcmask 1041408
  %v42 = vsel %vm40, %v28, 0
  %44 = vmatprep.subr.mxu0 0.0
  %45 = vmatpush1.msra.mxu0 0.0
  %46 = vmatprep.subr.mxu0 0.0
  %47 = vmatpush1.msra.mxu0 0.0
  %48 = vmatprep.subr.mxu0 0.0
  %49 = vmatpush1.msra.mxu0 0.0
  %50 = vmatprep.subr.mxu0 0.0
  %51 = vmatpush1.msra.mxu0 0.0
  %52 = vmatprep.subr.mxu0 0.0
  %53 = vmatpush1.msra.mxu0 0.0
  %54 = vmatprep.subr.mxu0 0.0
  %55 = vmatpush1.msra.mxu0 0.0
  %56 = vmatprep.subr.mxu0 0.0
  %57 = vmatpush1.msra.mxu0 0.0
  %58 = vmatprep.subr.mxu0 0.0
  %59 = vmatpush1.msra.mxu0 0.0
  %60 = vmatprep.subr.mxu0 0.0
  %61 = vmatpush1.msra.mxu0 0.0
  %62 = vmatprep.subr.mxu0 0.0
  %63 = vmatpush1.msra.mxu0 0.0
  %64 = vmatprep.subr.mxu0 0.0
  %65 = vmatpush1.msra.mxu0 0.0
  %66 = vmatprep.subr.mxu0 0.0
  %67 = vmatpush1.msra.mxu0 0.0
  %68 = vmatprep.subr.mxu0 0.0
  %69 = vmatpush1.msra.mxu0 0.0
  %70 = vmatprep.subr.mxu0 0.0
  %71 = vmatpush1.msra.mxu0 0.0
  %72 = vmatprep.subr.mxu0 0.0
  %73 = vmatpush1.msra.mxu0 0.0
  %74 = vmatprep.subr.mxu0 0.0
  %75 = vmatpush1.msra.mxu0 %v42
  %76 = vmatprep.subr.mxu0 0.0
  %77 = vmatpush2.msra.mxu0 0.0
  %78 = vmatprep.subr.mxu0 0.0
  %79 = vmatpush2.msra.mxu0 0.0
  %80 = vmatprep.subr.mxu0 0.0
  %81 = vmatpush2.msra.mxu0 0.0
  %82 = vmatprep.subr.mxu0 0.0
  %83 = vmatpush2.msra.mxu0 0.0
  %84 = vmatprep.subr.mxu0 0.0
  %85 = vmatpush2.msra.mxu0 0.0
  %86 = vmatprep.subr.mxu0 0.0
  %87 = vmatpush2.msra.mxu0 0.0
  %88 = vmatprep.subr.mxu0 0.0
  %89 = vmatpush2.msra.mxu0 0.0
  %90 = vmatprep.subr.mxu0 0.0
  %91 = vmatpush2.msra.mxu0 0.0
  %92 = vmatprep.subr.mxu0 0.0
  %93 = vmatpush2.msra.mxu0 0.0
  %94 = vmatprep.subr.mxu0 0.0
  %95 = vmatpush2.msra.mxu0 0.0
  %96 = vmatprep.subr.mxu0 0.0
  %97 = vmatpush2.msra.mxu0 0.0
  %98 = vmatprep.subr.mxu0 0.0
  %99 = vmatpush2.msra.mxu0 0.0
  %100 = vmatprep.subr.mxu0 0.0
  %101 = vmatpush2.msra.mxu0 0.0
  %102 = vmatprep.subr.mxu0 0.0
  %103 = vmatpush2.msra.mxu0 0.0
  %104 = vmatprep.subr.mxu0 0.0
  %105 = vmatpush2.msra.mxu0 0.0
  %106 = vmatprep.subr.mxu0 0.0
  %107 = vmatpush2.msra.mxu0 0.0
  %108 = vmatprep.mubr.f32.mxu0 0.0
  %109 = vmatmul.mubr.f32.gmra.mxu0 %v38
  %v110 = vpop.f32.mrf.mxu0
  %v111 = vadd.f32 %v34, %v110
  %v112 = vpop.f32.mrf.mxu0
  %113 = vdwg.mxu0
  %v114 = vmax.f32 %v111, 0.0
  %v115 = vpack.c.bf16 %v114, %v114
  %v116 = vld [vmem:[%s3] sm:$0xf]
  %v117 = vld [vmem:[%s3 + $0x4] sm:$0xf]
  %v118 = vld [vmem:[%s3 + $0x8] sm:$0xf]
  %v119 = vld [vmem:[%s3 + $0xc] sm:$0xf]
  %v120 = vld [vmem:[%s3 + $0x10] sm:$0xf]
  %v121 = vld [vmem:[%s3 + $0x14] sm:$0xf]
  %v122 = vld [vmem:[%s3 + $0x18] sm:$0xf]
  %v123 = vld [vmem:[%s3 + $0x1c] sm:$0xf]
  %v124 = vld [vmem:[%s4] sm:$0x1]
  %v126 = vlaneseq
  %v127 = vshrl.u32 %v126, 7
  %v128 = vsub.s32 0, %v127
  %v129 = vrot.slane %v124, %v128
  %v139 = vunpack.c.l.b16 %v116
  %v140 = vunpack.c.l.b16 %v117
  %v141 = vunpack.c.l.b16 %v118
  %v142 = vunpack.c.l.b16 %v119
  %v143 = vunpack.c.l.b16 %v120
  %v144 = vunpack.c.l.b16 %v121
  %v145 = vunpack.c.l.b16 %v122
  %v146 = vunpack.c.l.b16 %v123
  %v147 = vpack.c.b16 %v140, %v139
  %v148 = vpack.c.b16 %v142, %v141
  %v149 = vpack.c.b16 %v144, %v143
  %v150 = vpack.c.b16 %v146, %v145
  %vm155 = vcmask 523264
  %v157 = vsel %vm155, %v115, 0
  %159 = vmatprep.subr.bf16.mxu0 0
  %160 = vmatpush1.bf16.msra.mxu0 0
  %161 = vmatprep.subr.bf16.mxu0 0
  %162 = vmatpush1.bf16.msra.mxu0 0
  %163 = vmatprep.subr.bf16.mxu0 0
  %164 = vmatpush1.bf16.msra.mxu0 0
  %165 = vmatprep.subr.bf16.mxu0 0
  %166 = vmatpush1.bf16.msra.mxu0 0
  %167 = vmatprep.subr.bf16.mxu0 0
  %168 = vmatpush1.bf16.msra.mxu0 %v150
  %169 = vmatprep.subr.bf16.mxu0 0
  %170 = vmatpush1.bf16.msra.mxu0 %v149
  %171 = vmatprep.subr.bf16.mxu0 0
  %172 = vmatpush1.bf16.msra.mxu0 %v148
  %173 = vmatprep.subr.bf16.mxu0 0
  %174 = vmatpush1.bf16.msra.mxu0 %v147
  %175 = vmatprep.subr.bf16.mxu0 0
  %176 = vmatpush2.bf16.msra.mxu0 0
  %177 = vmatprep.subr.bf16.mxu0 0
  %178 = vmatpush2.bf16.msra.mxu0 0
  %179 = vmatprep.subr.bf16.mxu0 0
  %180 = vmatpush2.bf16.msra.mxu0 0
  %181 = vmatprep.subr.bf16.mxu0 0
  %182 = vmatpush2.bf16.msra.mxu0 0
  %183 = vmatprep.subr.bf16.mxu0 0
  %184 = vmatpush2.bf16.msra.mxu0 0
  %185 = vmatprep.subr.bf16.mxu0 0
  %186 = vmatpush2.bf16.msra.mxu0 0
  %187 = vmatprep.subr.bf16.mxu0 0
  %188 = vmatpush2.bf16.msra.mxu0 0
  %189 = vmatprep.subr.bf16.mxu0 0
  %190 = vmatpush2.bf16.msra.mxu0 0
  %191 = vmatprep.mubr.bf16.mxu0 0
  %192 = vmatmul.mubr.bf16.gmra.mxu0 %v157
  %v193 = vpop.f32.mrf.mxu0
  %v194 = vadd.f32 %v129, %v193
  %v195 = vpop.f32.mrf.mxu0
  %v196 = vpop.f32.mrf.mxu0
  %v197 = vpop.f32.mrf.mxu0
  %198 = vdwg.mxu0
  %v199 = vmax.f32 %v194, 0.0
  %v200 = vpack.c.bf16 %v199, %v199
  %v201 = vld [vmem:[%s5] sm:$0xf]
  %v202 = vld [vmem:[%s5 + $0x4] sm:$0xf]
  %v203 = vld [vmem:[%s5 + $0x8] sm:$0xf]
  %v204 = vld [vmem:[%s5 + $0xc] sm:$0xf]
  %v205 = vld [vmem:[%s5 + $0x10] sm:$0xf]
  %v206 = vld [vmem:[%s5 + $0x14] sm:$0xf]
  %v207 = vld [vmem:[%s5 + $0x18] sm:$0xf]
  %v208 = vld [vmem:[%s5 + $0x1c] sm:$0xf]
  %v209 = vld [vmem:[%s6] sm:$0x1]
  %v211 = vlaneseq
  %v212 = vshrl.u32 %v211, 7
  %v213 = vsub.s32 0, %v212
  %v214 = vrot.slane %v209, %v213
  %v224 = vunpack.c.l.b16 %v201
  %v225 = vunpack.c.l.b16 %v202
  %v226 = vunpack.c.l.b16 %v203
  %v227 = vunpack.c.l.b16 %v204
  %v228 = vunpack.c.l.b16 %v205
  %v229 = vunpack.c.l.b16 %v206
  %v230 = vunpack.c.l.b16 %v207
  %v231 = vunpack.c.l.b16 %v208
  %v232 = vpack.c.b16 %v225, %v224
  %v233 = vpack.c.b16 %v227, %v226
  %v234 = vpack.c.b16 %v229, %v228
  %v235 = vpack.c.b16 %v231, %v230
  %v241 = vsel %vm155, %v200, 0
  %243 = vmatprep.subr.bf16.mxu0 0
  %244 = vmatpush1.bf16.msra.mxu0 0
  %245 = vmatprep.subr.bf16.mxu0 0
  %246 = vmatpush1.bf16.msra.mxu0 0
  %247 = vmatprep.subr.bf16.mxu0 0
  %248 = vmatpush1.bf16.msra.mxu0 0
  %249 = vmatprep.subr.bf16.mxu0 0
  %250 = vmatpush1.bf16.msra.mxu0 0
  %251 = vmatprep.subr.bf16.mxu0 0
  %252 = vmatpush1.bf16.msra.mxu0 %v235
  %253 = vmatprep.subr.bf16.mxu0 0
  %254 = vmatpush1.bf16.msra.mxu0 %v234
  %255 = vmatprep.subr.bf16.mxu0 0
  %256 = vmatpush1.bf16.msra.mxu0 %v233
  %257 = vmatprep.subr.bf16.mxu0 0
  %258 = vmatpush1.bf16.msra.mxu0 %v232
  %259 = vmatprep.subr.bf16.mxu0 0
  %260 = vmatpush2.bf16.msra.mxu0 0
  %261 = vmatprep.subr.bf16.mxu0 0
  %262 = vmatpush2.bf16.msra.mxu0 0
  %263 = vmatprep.subr.bf16.mxu0 0
  %264 = vmatpush2.bf16.msra.mxu0 0
  %265 = vmatprep.subr.bf16.mxu0 0
  %266 = vmatpush2.bf16.msra.mxu0 0
  %267 = vmatprep.subr.bf16.mxu0 0
  %268 = vmatpush2.bf16.msra.mxu0 0
  %269 = vmatprep.subr.bf16.mxu0 0
  %270 = vmatpush2.bf16.msra.mxu0 0
  %271 = vmatprep.subr.bf16.mxu0 0
  %272 = vmatpush2.bf16.msra.mxu0 0
  %273 = vmatprep.subr.bf16.mxu0 0
  %274 = vmatpush2.bf16.msra.mxu0 0
  %275 = vmatprep.mubr.bf16.mxu0 0
  %276 = vmatmul.mubr.bf16.gmra.mxu0 %v241
  %v277 = vpop.f32.mrf.mxu0
  %v278 = vadd.f32 %v214, %v277
  %v279 = vpop.f32.mrf.mxu0
  %v280 = vpop.f32.mrf.mxu0
  %v281 = vpop.f32.mrf.mxu0
  %282 = vdwg.mxu0
  %v283 = vmul.f32 %v278, %v278
  %v284 = vsel %vm36, %v283, 0.0
  %285 = vadd.xlane.f32.xlu0 %v284
  %v286 = vpop.xlane.xlu0 %285
  %v287 = vmax.f32 %v286, 1e-24
  %v288 = vrsqrt.pop %v287
  %v289 = vmul.f32 %v278, %v288
  %290 = vst.msk [vmem:[%s7] sm:$0xff] %vm36, %v289
  // Predicated region
  $region30: #{tpu_custom_call.1} parent=0 // pred_check
    _
  $region31: #{tpu_custom_call.1} parent=0 // pred_check_branch
    %292 = sbr.rel (0) target = $region33
  $region32: #{tpu_custom_call.1} parent=0 // pred_region
    _
  $region33: #{tpu_custom_call.1} parent=0 // pred_fallthru
    _
  // Predicated region
  $region34: #{tpu_custom_call.1} parent=0 // pred_check
    _
  $region35: #{tpu_custom_call.1} parent=0 // pred_check_branch
    %294 = sbr.rel (0) target = $region37
  $region36: #{tpu_custom_call.1} parent=0 // pred_region
    _
  $region37: #{tpu_custom_call.1} parent=0 // pred_fallthru
    _

</llo_original>
